<compile_context>
chip_gen: v5e
topology: v5e:2x2
jax: 0.10.0
libtpu: 0.0.40
codegen_flags: <defaults>
</compile_context>

<pallas_src>
import math
import jax
import jax.numpy as jnp
from jax.experimental import pallas as pl
from jax.experimental.pallas import tpu as pltpu


def _round_up(x, m):
    return ((x + m - 1) // m) * m


def _fc_kernel(x_ref, wt_ref, b_ref, o_ref):
    # x_ref : (tm, H)    input batch tile
    # wt_ref: (H, tn)    pre-transposed, lane-padded weight slab
    # b_ref : (1, tn)    f32 bias slab (zero-padded)
    # o_ref : (tm, tn)   output tile (lane-dense, multiple of 128)
    acc = jnp.dot(x_ref[...], wt_ref[...], preferred_element_type=jnp.float32)
    o_ref[...] = (acc + b_ref[...].astype(jnp.float32)).astype(o_ref.dtype)


def prepare_feat_classifier_params(weight, bias, *, compute_dtype=jnp.float32,
                                   lane_multiple=128):
    """One-time parameter preparation (do NOT call per forward).

    weight: [class_num, hidden_dim], bias: [class_num]
    Returns (wt_padded [H, C_pad], bias_padded [1, C_pad]) with C_pad a
    multiple of `lane_multiple`. Use compute_dtype=jnp.bfloat16 on v6e/v7x to
    halve weight HBM/VMEM traffic (accumulation stays f32 in the kernel).
    """
    C, H = weight.shape
    C_pad = _round_up(C, lane_multiple)
    wt = jnp.zeros((H, C_pad), dtype=compute_dtype)
    wt = wt.at[:, :C].set(weight.T.astype(compute_dtype))
    b = jnp.zeros((1, C_pad), dtype=jnp.float32)
    b = b.at[:, :C].set(bias.astype(jnp.float32))
    return wt, b


def feat_classifier_forward(x, wt_padded, bias_padded, class_num, *,
                            tm=128, tn=512, force_pallas=False,
                            min_pallas_flops=1 << 22):
    """x: [B, H]; wt_padded: [H, C_pad]; bias_padded: [1, C_pad] -> [B, class_num]"""
    B, H = x.shape
    H2, C_pad = wt_padded.shape
    assert H == H2
    assert bias_padded.shape == (1, C_pad)
    assert C_pad % 128 == 0 and class_num <= C_pad

    compute_dtype = wt_padded.dtype
    x_c = x.astype(compute_dtype)

    # Small-problem fallback: per-grid-step + launch overhead dominates there.
    if (not force_pallas) and (2 * B * H * C_pad < min_pallas_flops):
        out = jnp.dot(x_c, wt_padded, preferred_element_type=jnp.float32)
        out = (out + bias_padded).astype(x.dtype)
        return out[:, :class_num]

    # Tile sizes: tm multiple of 8 (f32 sublane), tn multiple of 128 (lanes).
    tm_eff = min(tm, _round_up(B, 8))
    tn_eff = min(tn, C_pad)

    grid = (pl.cdiv(B, tm_eff), pl.cdiv(C_pad, tn_eff))

    itemsize = jnp.dtype(compute_dtype).itemsize
    cost = pl.CostEstimate(
        flops=2 * B * H * C_pad,
        transcendentals=0,
        bytes_accessed=(B * H + H * C_pad) * itemsize
        + (C_pad + B * C_pad) * 4,
    )

    # NOTE: when C_pad fits in a single tn tile, the weight index_map is
    # constant; on v7x pipeline_mode=pl.Buffered(1) on that spec would halve
    # its VMEM footprint (left out here for cross-version lowering robustness).
    out_padded = pl.pallas_call(
        _fc_kernel,
        out_shape=jax.ShapeDtypeStruct((B, C_pad), x.dtype),
        grid_spec=pltpu.PrefetchScalarGridSpec(
            num_scalar_prefetch=0,
            grid=grid,
            in_specs=[
                pl.BlockSpec((tm_eff, H), lambda i, j: (i, 0)),   # batch tile of x
                pl.BlockSpec((H, tn_eff), lambda i, j: (0, j)),   # weight slab
                pl.BlockSpec((1, tn_eff), lambda i, j: (0, j)),   # bias slab
            ],
            out_specs=pl.BlockSpec((tm_eff, tn_eff), lambda i, j: (i, j)),
        ),
        compiler_params=pltpu.CompilerParams(
            dimension_semantics=("parallel", "parallel"),
            vmem_limit_bytes=48 * 1024 * 1024,
        ),
        cost_estimate=cost,
    )(x_c, wt_padded, bias_padded)

    if C_pad != class_num:
        return out_padded[:, :class_num]
    return out_padded


def init_feat_classifier_params(key, class_num, hidden_dim):
    """Deterministic init matching the PyTorch module:
       nn.Linear with xavier_normal_ weight and zero bias (init_weights)."""
    std = math.sqrt(2.0 / (hidden_dim + class_num))  # xavier_normal_, gain=1
    weight = std * jax.random.normal(key, (class_num, hidden_dim), dtype=jnp.float32)
    bias = jnp.zeros((class_num,), dtype=jnp.float32)
    return weight, bias


if __name__ == "__main__":
    key = jax.random.PRNGKey(0)
    k_x, k_w = jax.random.split(key)

    batch, hidden_dim, class_num = 8, 32, 10
    x = jax.random.normal(k_x, (batch, hidden_dim), dtype=jnp.float32)
    weight, bias = init_feat_classifier_params(k_w, class_num, hidden_dim)

    # One-time param prep (transpose + lane padding) outside the hot path.
    wt_padded, bias_padded = prepare_feat_classifier_params(
        weight, bias, compute_dtype=jnp.float32)

    # force_pallas=True so the kernel itself is exercised even at this tiny size
    # (real deployments let the small-problem fallback kick in automatically).
    out = feat_classifier_forward(x, wt_padded, bias_padded, class_num,
                                  force_pallas=True)
    out = jax.block_until_ready(out)

    # sanity check against plain JAX reference
    ref = x @ weight.T + bias
    assert out.shape == (batch, class_num)
    assert jnp.allclose(out, ref, atol=1e-5, rtol=1e-5)

    print("KERNEL_OK")
</pallas_src>

<mosaic_0001>
module attributes {stable_mosaic.version = 11 : i64} {
  func.func @_fc_kernel(%arg0: i32, %arg1: i32, %arg2: memref<8x32xf32, #tpu.memory_space<vmem>>, %arg3: memref<32x128xf32, #tpu.memory_space<vmem>>, %arg4: memref<1x128xf32, #tpu.memory_space<vmem>>, %arg5: memref<8x128xf32, #tpu.memory_space<vmem>>) attributes {dimension_semantics = [#tpu.dimension_semantics<parallel>, #tpu.dimension_semantics<parallel>], iteration_bounds = array<i64: 1, 1>, scalar_prefetch = 0 : i64, scratch_operands = 0 : i64, tpu.core_type = #tpu.core_type<tc>, window_params = [{transform_indices = @transform_0, window_bounds = array<i64: 8, 32>}, {transform_indices = @transform_1, window_bounds = array<i64: 32, 128>}, {transform_indices = @transform_2, window_bounds = array<i64: 1, 128>}, {transform_indices = @transform_3, window_bounds = array<i64: 8, 128>}]} {
    %c0 = arith.constant 0 : index
    %c0_0 = arith.constant 0 : index
    %0 = vector.load %arg2[%c0, %c0_0] : memref<8x32xf32, #tpu.memory_space<vmem>>, vector<8x32xf32>
    %c0_1 = arith.constant 0 : index
    %c0_2 = arith.constant 0 : index
    %1 = vector.load %arg3[%c0_1, %c0_2] : memref<32x128xf32, #tpu.memory_space<vmem>>, vector<32x128xf32>
    %cst = arith.constant dense<0.000000e+00> : vector<8x128xf32>
    %2 = tpu.matmul %0, %1, %cst {dimension_numbers = #tpu.dot_dimension_numbers<[1], [0], [0], [1], [0, 0, 1, 1], [], []>} : vector<8x32xf32>, vector<32x128xf32>, vector<8x128xf32> -> vector<8x128xf32>
    %c0_3 = arith.constant 0 : index
    %c0_4 = arith.constant 0 : index
    %3 = vector.load %arg4[%c0_3, %c0_4] : memref<1x128xf32, #tpu.memory_space<vmem>>, vector<1x128xf32>
    %4 = vector.broadcast %3 : vector<1x128xf32> to vector<8x128xf32>
    %5 = arith.addf %2, %4 : vector<8x128xf32>
    %c0_5 = arith.constant 0 : index
    %c0_6 = arith.constant 0 : index
    %6 = vector.load %arg5[%c0_5, %c0_6] : memref<8x128xf32, #tpu.memory_space<vmem>>, vector<8x128xf32>
    tpu.vector_store %arg5[%c0_5, %c0_6], %5 {strides = array<i32>} : memref<8x128xf32, #tpu.memory_space<vmem>>, vector<8x128xf32>,
    return
  }
  func.func @transform_0(%arg0: i32, %arg1: i32) -> (i32, i32) {
    %c0_i32 = arith.constant 0 : i32
    %c0_i32_0 = arith.constant 0 : i32
    return %arg0, %c0_i32 : i32, i32
  }
  func.func @transform_1(%arg0: i32, %arg1: i32) -> (i32, i32) {
    %c0_i32 = arith.constant 0 : i32
    %c0_i32_0 = arith.constant 0 : i32
    return %c0_i32, %arg1 : i32, i32
  }
  func.func @transform_2(%arg0: i32, %arg1: i32) -> (i32, i32) {
    %c0_i32 = arith.constant 0 : i32
    %c0_i32_0 = arith.constant 0 : i32
    return %c0_i32, %arg1 : i32, i32
  }
  func.func @transform_3(%arg0: i32, %arg1: i32) -> (i32, i32) {
    %c0_i32 = arith.constant 0 : i32
    return %arg0, %arg1 : i32, i32
  }
}

</mosaic_0001>

<llo_original>
// kernel: tpu_custom_call.1
$region0: #{tpu_custom_call.1}
  #allocation0 [shape = 'u32[]', space=smem, size = 0x4, offset = 0x4, fixed_abs, tag = 'smem constant byte address 0x4 - core index']
  #allocation1 [shape = 'u32[72,128]{1,0:T(1,128)}', space=vmem, size = 0x9000, scoped, tag = 'internal scratch']
  %s0 = inlined_call_operand.hbm [shape: f32[8,32], index: 0, kind: input, shape index: {}]
  %s1 = inlined_call_operand.hbm [shape: f32[32,128], index: 1, kind: input, shape index: {}]
  %s2 = inlined_call_operand.vmem [shape: f32[1,128], index: 2, kind: input, shape index: {}]
  %s3 = inlined_call_operand.hbm [shape: f32[8,128], index: 3, kind: output, shape index: {}]
  %s4 = sld [smem:[#allocation0]]
  $region30: #{tpu_custom_call.1} parent=0
    _
  %s6 = ssub.s32 1, %s4
  %s7 = scalar_select 0, %s6, %s4
  $region1: #{tpu_custom_call.1} parent=0
    #allocation2 [shape = 'u8[4096]{0}', space=vmem, size = 0x1000, scoped, tag = 'input window, operand 0, single buffered']
    #allocation3 [shape = 's32[1]{0}', space=sflag, size = 0x4, scoped, tag = 'scoped memory for tpu_custom_call.1']
    #allocation4 [shape = 's32[1]{0}', space=sflag, size = 0x4, scoped, tag = 'scoped memory for tpu_custom_call.1']
    #allocation5 [shape = 'u8[16384]{0}', space=vmem, size = 0x4000, scoped, tag = 'input window, operand 1, single buffered']
    #allocation6 [shape = 's32[1]{0}', space=sflag, size = 0x4, scoped, tag = 'scoped memory for tpu_custom_call.1']
    #allocation7 [shape = 'u8[4096]{0}', space=vmem, size = 0x1000, scoped, tag = 'output window, operand 0, single buffered']
    %8 = vsyncpa [#allocation3], 0
    %9 = vsyncpa [#allocation6], 0
    %10 = vsyncpa [#allocation4], 0
    // Predicated region
    $region2: #{tpu_custom_call.1} parent=1 // pred_check
      _
    $region3: #{tpu_custom_call.1} parent=1 // pred_check_branch
      %12 = sbr.rel (0) target = $region5
    $region4: #{tpu_custom_call.1} parent=1 // pred_region
      %14 = vsyncadd [#allocation3], 0
      %s16 = sshll.u32 %s0, 4
      %s17 = int_to_ptr.hbm [resolvable:$true] %s16
      %s18 = sshll.u32 [#allocation2], 4
      %s19 = int_to_ptr.vmem [resolvable:$true] %s18
      %21 = dma.hbm_to_vmem [thread:$0]  %s17, 128, %s19, [#allocation3]
    $region5: #{tpu_custom_call.1} parent=1 // pred_fallthru
      _
    // Predicated region
    $region6: #{tpu_custom_call.1} parent=1 // pred_check
      _
    $region7: #{tpu_custom_call.1} parent=1 // pred_check_branch
      %23 = sbr.rel (0) target = $region9
    $region8: #{tpu_custom_call.1} parent=1 // pred_region
      %25 = vsyncadd [#allocation6], 0
      %s26 = sshll.u32 %s1, 4
      %s27 = int_to_ptr.hbm [resolvable:$true] %s26
      %s28 = sshll.u32 [#allocation5], 4
      %s29 = int_to_ptr.vmem [resolvable:$true] %s28
      %34 = dma.hbm_to_vmem [thread:$0]  %s27, 512, %s29, [#allocation6], 128, 128, 8
    $region9: #{tpu_custom_call.1} parent=1 // pred_fallthru
      _
    // Predicated region
    $region10: #{tpu_custom_call.1} parent=1 // pred_check
      _
    $region11: #{tpu_custom_call.1} parent=1 // pred_check_branch
      %36 = sbr.rel (0) target = $region13
    $region12: #{tpu_custom_call.1} parent=1 // pred_region
      _
    $region13: #{tpu_custom_call.1} parent=1 // pred_fallthru
      _
    // Predicated region
    $region14: #{tpu_custom_call.1} parent=1 // pred_check
      _
    $region15: #{tpu_custom_call.1} parent=1 // pred_check_branch
      %38 = sbr.rel (0) target = $region17
    $region16: #{tpu_custom_call.1} parent=1 // pred_region
      %40 = dma.done [#allocation3], 128
    $region17: #{tpu_custom_call.1} parent=1 // pred_fallthru
      _
    // Predicated region
    $region18: #{tpu_custom_call.1} parent=1 // pred_check
      _
    $region19: #{tpu_custom_call.1} parent=1 // pred_check_branch
      %42 = sbr.rel (0) target = $region21
    $region20: #{tpu_custom_call.1} parent=1 // pred_region
      %44 = dma.done [#allocation6], 512
    $region21: #{tpu_custom_call.1} parent=1 // pred_fallthru
      _
    %v45 = vld [vmem:[#allocation2] sm:$0xff]
    %v46 = vld [vmem:[#allocation5] sm:$0xff]
    %v47 = vld [vmem:[#allocation5 + $0x8] sm:$0xff]
    %v48 = vld [vmem:[#allocation5 + $0x10] sm:$0xff]
    %v49 = vld [vmem:[#allocation5 + $0x18] sm:$0xff]
    %v50 = vld [vmem:[%s2] sm:$0x1]
    %v52 = vperm.slane %v50, 0
    %vm54 = vcmask 261120
    %v56 = vsel %vm54, %v45, 0
    %58 = vmatpush.msra.mxu0 0.0
    %59 = vmatpush.msra.mxu0 0.0
    %60 = vmatpush.msra.mxu0 0.0
    %61 = vmatpush.msra.mxu0 0.0
    %62 = vmatpush.msra.mxu0 0.0
    %63 = vmatpush.msra.mxu0 0.0
    %64 = vmatpush.msra.mxu0 0.0
    %65 = vmatpush.msra.mxu0 0.0
    %66 = vmatpush.msra.mxu0 0.0
    %67 = vmatpush.msra.mxu0 0.0
    %68 = vmatpush.msra.mxu0 0.0
    %69 = vmatpush.msra.mxu0 0.0
    %70 = vmatpush.msra.mxu0 %v49
    %71 = vmatpush.msra.mxu0 %v48
    %72 = vmatpush.msra.mxu0 %v47
    %73 = vmatpush.msra.mxu0 %v46
    %74 = vmatmul.f32.gmra.mxu0 %v56
    %v75 = vpop.f32.mrf.mxu0
    %v76 = vadd.f32 %v52, %v75
    %77 = vdwg.mxu0
    %78 = vst [vmem:[#allocation7] sm:$0xff] %v76
    // Predicated region
    $region22: #{tpu_custom_call.1} parent=1 // pred_check
      _
    $region23: #{tpu_custom_call.1} parent=1 // pred_check_branch
      %80 = sbr.rel (0) target = $region25
    $region24: #{tpu_custom_call.1} parent=1 // pred_region
      %82 = vsyncadd [#allocation4], 0
      %s84 = sshll.u32 [#allocation7], 4
      %s85 = int_to_ptr.vmem [resolvable:$true] %s84
      %s86 = sshll.u32 %s3, 4
      %s87 = int_to_ptr.hbm [resolvable:$true] %s86
      %89 = dma.vmem_to_hbm [thread:$0]  %s85, 128, %s87, [#allocation4]
    $region25: #{tpu_custom_call.1} parent=1 // pred_fallthru
      _
    // Predicated region
    $region26: #{tpu_custom_call.1} parent=1 // pred_check
      _
    $region27: #{tpu_custom_call.1} parent=1 // pred_check_branch
      %91 = sbr.rel (0) target = $region29
    $region28: #{tpu_custom_call.1} parent=1 // pred_region
      %93 = dma.done [#allocation4], 128
    $region29: #{tpu_custom_call.1} parent=1 // pred_fallthru
      _
    %94 = vsyncpa [#allocation3], 1
    %95 = vsyncpa [#allocation6], 1
    %96 = vsyncpa [#allocation4], 1

</llo_original>
